<compile_context>
chip_gen: v6e
topology: v6e:2x2x1
jax: 0.10.0
libtpu: 0.0.40
codegen_flags: <defaults>
</compile_context>

<pallas_src>
import functools

import jax
import jax.numpy as jnp
from jax.experimental import pallas as pl
from jax.experimental.pallas import tpu as pltpu

NEG_SLOPE = 0.01   # PyTorch nn.LeakyReLU default negative_slope
LANE = 128
SUBLANE = 8


def _round_up(x, m):
    return ((x + m - 1) // m) * m


def critic_kernel(s_ref, a_ref, w1s_ref, w1a_ref, b1_ref, w2_ref, b2_ref,
                  w3_ref, b3_ref, o_ref):
    # Layer 1: cat(state, action) @ W1 expressed as two bf16 MXU matmuls summed
    # into one f32 accumulator (avoids any concat / feature padding of x).
    h1 = (jnp.dot(s_ref[...], w1s_ref[...], preferred_element_type=jnp.float32)
          + jnp.dot(a_ref[...], w1a_ref[...], preferred_element_type=jnp.float32)
          + b1_ref[...])
    h1 = jnp.maximum(h1, NEG_SLOPE * h1)
    # TODO(synk): nn.Dropout(0.5) is implemented as eval-mode identity; a
    # training-mode forward would draw masks via pltpu.prng_seed +
    # pltpu.stateful_bernoulli and rescale by 1/(1-p).

    h2 = jnp.dot(h1.astype(jnp.bfloat16), w2_ref[...],
                 preferred_element_type=jnp.float32) + b2_ref[...]
    h2 = jnp.maximum(h2, NEG_SLOPE * h2)

    # Output layer has a single real column -> VPU multiply + XLU lane
    # reduction against the w3 row instead of a 128-wide padded matmul.
    v = jnp.sum(h2 * w3_ref[...], axis=-1, keepdims=True) + b3_ref[...]
    o_ref[...] = v


@functools.partial(jax.jit, static_argnames=("block_b",))
def critic_forward(state, action, params, *, block_b=512):
    """Fused Critic forward. state: (B, Ds), action: (B, Da). Returns (B, 1) f32."""
    w1, b1, w2, b2, w3, b3 = params

    B, sd = state.shape
    _, ad = action.shape
    d_in = sd + ad
    assert w1.shape[0] == d_in, (w1.shape, d_in)
    h1p = w1.shape[1]
    h2p = w2.shape[1]

    # First-layer weight split so layer 1 runs directly off the two inputs.
    w1s = w1[:sd]
    w1a = w1[sd:]

    # Batch tile: multiple of 8 sublanes, capped at block_b; if the whole batch
    # fits in one tile, split it so grid >= 2 (v7x megacore can use both TCs).
    tb_full = _round_up(max(B, 1), SUBLANE)
    if tb_full <= block_b:
        if B >= 2 * SUBLANE:
            tb = _round_up(-(-B // 2), SUBLANE)
        else:
            tb = tb_full
    else:
        tb = block_b
    b_pad = _round_up(B, tb)
    grid = (b_pad // tb,)

    sp = state.astype(jnp.bfloat16)
    ap = action.astype(jnp.bfloat16)
    if b_pad != B:
        sp = jnp.zeros((b_pad, sd), jnp.bfloat16).at[:B].set(sp)
        ap = jnp.zeros((b_pad, ad), jnp.bfloat16).at[:B].set(ap)

    # Per-generation VMEM budget (double-buffered batch I/O + resident weights
    # + f32 intermediates), with 2x margin. Stays well under v5e's 16 MiB
    # scoped default / v7x's 64 MiB physical at the default tile.
    vmem_bytes = int(
        2 * (tb * d_in * 2 + tb * 4)            # double-buffered batch in/out
        + d_in * h1p * 2 + h1p * 4              # w1 + b1
        + h1p * h2p * 2 + h2p * 4               # w2 + b2
        + h2p * 4 + 4                           # w3 row + b3
        + tb * (h1p + h2p) * 4                  # f32 intermediates
    )
    vmem_limit = min(max(2 * vmem_bytes + (2 << 20), 8 << 20), 48 << 20)

    flops = 2 * b_pad * (d_in * h1p + h1p * h2p + h2p)
    bytes_accessed = (b_pad * d_in * 2 + b_pad * 4
                      + d_in * h1p * 2 + h1p * h2p * 2
                      + (h1p + h2p + h2p + 1) * 4)

    out = pl.pallas_call(
        critic_kernel,
        out_shape=jax.ShapeDtypeStruct((b_pad, 1), jnp.float32),
        grid_spec=pltpu.PrefetchScalarGridSpec(
            num_scalar_prefetch=0,
            grid=grid,
            in_specs=[
                # state / action tiles pipeline over the batch grid
                pl.BlockSpec((tb, sd), lambda i: (i, 0)),
                pl.BlockSpec((tb, ad), lambda i: (i, 0)),
                # weights & biases: same block every step -> VMEM-resident
                pl.BlockSpec(w1s.shape, lambda i: (0, 0)),
                pl.BlockSpec(w1a.shape, lambda i: (0, 0)),
                pl.BlockSpec(b1.shape, lambda i: (0, 0)),
                pl.BlockSpec(w2.shape, lambda i: (0, 0)),
                pl.BlockSpec(b2.shape, lambda i: (0, 0)),
                pl.BlockSpec(w3.shape, lambda i: (0, 0)),
                pl.BlockSpec(b3.shape, lambda i: (0, 0)),
            ],
            out_specs=pl.BlockSpec((tb, 1), lambda i: (i, 0)),
        ),
        compiler_params=pltpu.CompilerParams(
            dimension_semantics=("parallel",),
            vmem_limit_bytes=vmem_limit),
        cost_estimate=pl.CostEstimate(
            flops=flops, transcendentals=0, bytes_accessed=bytes_accessed),
    )(sp, ap, w1s, w1a, b1, w2, b2, w3, b3)

    return out[:B]


def init_critic_params(key, input_dim, nn_layers=(300, 200), init_w=0.003):
    """Init mirroring the PyTorch Critic.__init__.

    Hidden Linear weights: kaiming_normal_(nonlinearity='relu') -> N(0, 2/fan_in).
    Hidden Linear biases:  PyTorch default U(-1/sqrt(fan_in), 1/sqrt(fan_in)).
    Output Linear weight & bias: U(-init_w, init_w).

    Layout: weights transposed (in, out).  Hidden out-dims zero-padded to
    multiples of 128 (lane / MXU aligned), weights bf16, biases f32 (1, out).
    The first-layer in-dim is left unpadded (kernel consumes state/action at
    their real widths).  The output layer is stored as a (1, h2_pad) f32 row
    plus a (1, 1) bias for the in-kernel VPU reduction.
    """
    keys = jax.random.split(key, 2 * len(nn_layers) + 2)
    params = []
    in_f = input_dim
    in_p = input_dim                      # first layer: no in-dim padding
    for i, out_f in enumerate(nn_layers):
        out_p = _round_up(out_f, LANE)
        std = (2.0 / in_f) ** 0.5
        w = std * jax.random.normal(keys[2 * i], (in_f, out_f), dtype=jnp.float32)
        bound = 1.0 / (in_f ** 0.5)
        b = jax.random.uniform(keys[2 * i + 1], (1, out_f), minval=-bound,
                               maxval=bound, dtype=jnp.float32)
        w_pad = jnp.zeros((in_p, out_p), jnp.float32).at[:in_f, :out_f].set(w)
        b_pad = jnp.zeros((1, out_p), jnp.float32).at[:, :out_f].set(b)
        params.extend([w_pad.astype(jnp.bfloat16), b_pad])
        in_f, in_p = out_f, out_p

    # Output layer: single column stored as a f32 row for the lane reduction.
    w = jax.random.uniform(keys[-2], (1, in_f), minval=-init_w, maxval=init_w,
                           dtype=jnp.float32)
    b = jax.random.uniform(keys[-1], (1, 1), minval=-init_w, maxval=init_w,
                           dtype=jnp.float32)
    w_pad = jnp.zeros((1, in_p), jnp.float32).at[:, :in_f].set(w)
    params.extend([w_pad, b])
    return tuple(params)


def critic_reference(state, action, params):
    """Pure-JAX reference matching the kernel's numerics (bf16 matmul inputs)."""
    w1, b1, w2, b2, w3, b3 = params
    x = jnp.concatenate([state, action], axis=-1)
    x = x.astype(jnp.bfloat16).astype(jnp.float32)
    h = x @ w1.astype(jnp.float32) + b1
    h = jnp.maximum(h, NEG_SLOPE * h)
    h = h.astype(jnp.bfloat16).astype(jnp.float32) @ w2.astype(jnp.float32) + b2
    h = jnp.maximum(h, NEG_SLOPE * h)
    v = jnp.sum(h * w3, axis=-1, keepdims=True) + b3
    return v


if __name__ == "__main__":
    key = jax.random.PRNGKey(0)
    k_params, k_state, k_action = jax.random.split(key, 3)

    state_dim = 24
    action_dim = 8
    nn_layers = (300, 200)  # module defaults

    params = init_critic_params(k_params, state_dim + action_dim, nn_layers)

    # Small batch (single grid step, batch-row padding path).
    batch = 4
    state = jax.random.normal(k_state, (batch, state_dim), dtype=jnp.float32)
    action = jax.random.normal(k_action, (batch, action_dim), dtype=jnp.float32)
    value = jax.block_until_ready(critic_forward(state, action, params))
    assert value.shape == (batch, 1), value.shape
    assert bool(jnp.all(jnp.isfinite(value)))
    ref = critic_reference(state, action, params)
    assert bool(jnp.allclose(value, ref, atol=1e-2, rtol=1e-2)), (value, ref)

    # Slightly larger batch (>= 2 grid steps -> exercises the megacore split).
    batch2 = 20
    state2 = jax.random.normal(k_state, (batch2, state_dim), dtype=jnp.float32)
    action2 = jax.random.normal(k_action, (batch2, action_dim), dtype=jnp.float32)
    value2 = jax.block_until_ready(critic_forward(state2, action2, params))
    assert value2.shape == (batch2, 1), value2.shape
    ref2 = critic_reference(state2, action2, params)
    assert bool(jnp.allclose(value2, ref2, atol=1e-2, rtol=1e-2)), (value2, ref2)

    print("KERNEL_OK")
</pallas_src>

<mosaic_0001>
module attributes {stable_mosaic.version = 11 : i64} {
  func.func @critic_kernel(%arg0: i32, %arg1: memref<8x24xbf16, #tpu.memory_space<vmem>>, %arg2: memref<8x8xbf16, #tpu.memory_space<vmem>>, %arg3: memref<24x384xbf16, #tpu.memory_space<vmem>>, %arg4: memref<8x384xbf16, #tpu.memory_space<vmem>>, %arg5: memref<1x384xf32, #tpu.memory_space<vmem>>, %arg6: memref<384x256xbf16, #tpu.memory_space<vmem>>, %arg7: memref<1x256xf32, #tpu.memory_space<vmem>>, %arg8: memref<1x256xf32, #tpu.memory_space<vmem>>, %arg9: memref<1x1xf32, #tpu.memory_space<vmem>>, %arg10: memref<8x1xf32, #tpu.memory_space<vmem>>) attributes {dimension_semantics = [#tpu.dimension_semantics<parallel>], iteration_bounds = array<i64: 1>, scalar_prefetch = 0 : i64, scratch_operands = 0 : i64, tpu.core_type = #tpu.core_type<tc>, window_params = [{transform_indices = @transform_0, window_bounds = array<i64: 8, 24>}, {transform_indices = @transform_1, window_bounds = array<i64: 8, 8>}, {pipeline_mode = #tpu.pipeline_mode<synchronous>, transform_indices = @transform_2, window_bounds = array<i64: 24, 384>}, {pipeline_mode = #tpu.pipeline_mode<synchronous>, transform_indices = @transform_3, window_bounds = array<i64: 8, 384>}, {pipeline_mode = #tpu.pipeline_mode<synchronous>, transform_indices = @transform_4, window_bounds = array<i64: 1, 384>}, {pipeline_mode = #tpu.pipeline_mode<synchronous>, transform_indices = @transform_5, window_bounds = array<i64: 384, 256>}, {pipeline_mode = #tpu.pipeline_mode<synchronous>, transform_indices = @transform_6, window_bounds = array<i64: 1, 256>}, {pipeline_mode = #tpu.pipeline_mode<synchronous>, transform_indices = @transform_7, window_bounds = array<i64: 1, 256>}, {pipeline_mode = #tpu.pipeline_mode<synchronous>, transform_indices = @transform_8, window_bounds = array<i64: 1, 1>}, {transform_indices = @transform_9, window_bounds = array<i64: 8, 1>}]} {
    %c0 = arith.constant 0 : index
    %c0_0 = arith.constant 0 : index
    %0 = vector.load %arg1[%c0, %c0_0] : memref<8x24xbf16, #tpu.memory_space<vmem>>, vector<8x24xbf16>
    %c0_1 = arith.constant 0 : index
    %c0_2 = arith.constant 0 : index
    %1 = vector.load %arg3[%c0_1, %c0_2] : memref<24x384xbf16, #tpu.memory_space<vmem>>, vector<24x384xbf16>
    %cst = arith.constant dense<0.000000e+00> : vector<8x384xf32>
    %2 = tpu.matmul %0, %1, %cst {dimension_numbers = #tpu.dot_dimension_numbers<[1], [0], [0], [1], [0, 0, 1, 1], [], []>} : vector<8x24xbf16>, vector<24x384xbf16>, vector<8x384xf32> -> vector<8x384xf32>
    %c0_3 = arith.constant 0 : index
    %c0_4 = arith.constant 0 : index
    %3 = vector.load %arg2[%c0_3, %c0_4] : memref<8x8xbf16, #tpu.memory_space<vmem>>, vector<8x8xbf16>
    %c0_5 = arith.constant 0 : index
    %c0_6 = arith.constant 0 : index
    %4 = vector.load %arg4[%c0_5, %c0_6] : memref<8x384xbf16, #tpu.memory_space<vmem>>, vector<8x384xbf16>
    %cst_7 = arith.constant dense<0.000000e+00> : vector<8x384xf32>
    %5 = tpu.matmul %3, %4, %cst_7 {dimension_numbers = #tpu.dot_dimension_numbers<[1], [0], [0], [1], [0, 0, 1, 1], [], []>} : vector<8x8xbf16>, vector<8x384xbf16>, vector<8x384xf32> -> vector<8x384xf32>
    %6 = arith.addf %2, %5 : vector<8x384xf32>
    %c0_8 = arith.constant 0 : index
    %c0_9 = arith.constant 0 : index
    %7 = vector.load %arg5[%c0_8, %c0_9] : memref<1x384xf32, #tpu.memory_space<vmem>>, vector<1x384xf32>
    %8 = vector.broadcast %7 : vector<1x384xf32> to vector<8x384xf32>
    %9 = arith.addf %6, %8 : vector<8x384xf32>
    %cst_10 = arith.constant 0.00999999977 : f32
    %10 = vector.broadcast %cst_10 : f32 to vector<8x384xf32>
    %11 = arith.mulf %10, %9 : vector<8x384xf32>
    %12 = arith.maximumf %9, %11 : vector<8x384xf32>
    %13 = arith.truncf %12 : vector<8x384xf32> to vector<8x384xbf16>
    %c0_11 = arith.constant 0 : index
    %c0_12 = arith.constant 0 : index
    %14 = vector.load %arg6[%c0_11, %c0_12] : memref<384x256xbf16, #tpu.memory_space<vmem>>, vector<384x256xbf16>
    %cst_13 = arith.constant dense<0.000000e+00> : vector<8x256xf32>
    %15 = tpu.matmul %13, %14, %cst_13 {dimension_numbers = #tpu.dot_dimension_numbers<[1], [0], [0], [1], [0, 0, 1, 1], [], []>} : vector<8x384xbf16>, vector<384x256xbf16>, vector<8x256xf32> -> vector<8x256xf32>
    %c0_14 = arith.constant 0 : index
    %c0_15 = arith.constant 0 : index
    %16 = vector.load %arg7[%c0_14, %c0_15] : memref<1x256xf32, #tpu.memory_space<vmem>>, vector<1x256xf32>
    %17 = vector.broadcast %16 : vector<1x256xf32> to vector<8x256xf32>
    %18 = arith.addf %15, %17 : vector<8x256xf32>
    %cst_16 = arith.constant 0.00999999977 : f32
    %19 = vector.broadcast %cst_16 : f32 to vector<8x256xf32>
    %20 = arith.mulf %19, %18 : vector<8x256xf32>
    %21 = arith.maximumf %18, %20 : vector<8x256xf32>
    %c0_17 = arith.constant 0 : index
    %c0_18 = arith.constant 0 : index
    %22 = vector.load %arg8[%c0_17, %c0_18] : memref<1x256xf32, #tpu.memory_space<vmem>>, vector<1x256xf32>
    %23 = vector.broadcast %22 : vector<1x256xf32> to vector<8x256xf32>
    %24 = arith.mulf %21, %23 : vector<8x256xf32>
    %cst_19 = arith.constant dense<0.000000e+00> : vector<8xf32>
    %25 = vector.multi_reduction <add>, %24, %cst_19 [1] : vector<8x256xf32> to vector<8xf32>
    %26 = vector.shape_cast %25 : vector<8xf32> to vector<8x1xf32>
    %c0_20 = arith.constant 0 : index
    %c0_21 = arith.constant 0 : index
    %27 = vector.load %arg9[%c0_20, %c0_21] : memref<1x1xf32, #tpu.memory_space<vmem>>, vector<1x1xf32>
    %28 = vector.broadcast %27 : vector<1x1xf32> to vector<8x1xf32>
    %29 = arith.addf %26, %28 : vector<8x1xf32>
    %c0_22 = arith.constant 0 : index
    %c0_23 = arith.constant 0 : index
    %30 = vector.load %arg10[%c0_22, %c0_23] : memref<8x1xf32, #tpu.memory_space<vmem>>, vector<8x1xf32>
    tpu.vector_store %arg10[%c0_22, %c0_23], %29 {strides = array<i32>} : memref<8x1xf32, #tpu.memory_space<vmem>>, vector<8x1xf32>,
    return
  }
  func.func @transform_0(%arg0: i32) -> (i32, i32) {
    %c0_i32 = arith.constant 0 : i32
    %c0_i32_0 = arith.constant 0 : i32
    return %arg0, %c0_i32 : i32, i32
  }
  func.func @transform_1(%arg0: i32) -> (i32, i32) {
    %c0_i32 = arith.constant 0 : i32
    %c0_i32_0 = arith.constant 0 : i32
    return %arg0, %c0_i32 : i32, i32
  }
  func.func @transform_2(%arg0: i32) -> (i32, i32) {
    %c0_i32 = arith.constant 0 : i32
    %c0_i32_0 = arith.constant 0 : i32
    %c0_i32_1 = arith.constant 0 : i32
    return %c0_i32, %c0_i32_0 : i32, i32
  }
  func.func @transform_3(%arg0: i32) -> (i32, i32) {
    %c0_i32 = arith.constant 0 : i32
    %c0_i32_0 = arith.constant 0 : i32
    %c0_i32_1 = arith.constant 0 : i32
    return %c0_i32, %c0_i32_0 : i32, i32
  }
  func.func @transform_4(%arg0: i32) -> (i32, i32) {
    %c0_i32 = arith.constant 0 : i32
    %c0_i32_0 = arith.constant 0 : i32
    %c0_i32_1 = arith.constant 0 : i32
    return %c0_i32, %c0_i32_0 : i32, i32
  }
  func.func @transform_5(%arg0: i32) -> (i32, i32) {
    %c0_i32 = arith.constant 0 : i32
    %c0_i32_0 = arith.constant 0 : i32
    %c0_i32_1 = arith.constant 0 : i32
    return %c0_i32, %c0_i32_0 : i32, i32
  }
  func.func @transform_6(%arg0: i32) -> (i32, i32) {
    %c0_i32 = arith.constant 0 : i32
    %c0_i32_0 = arith.constant 0 : i32
    %c0_i32_1 = arith.constant 0 : i32
    return %c0_i32, %c0_i32_0 : i32, i32
  }
  func.func @transform_7(%arg0: i32) -> (i32, i32) {
    %c0_i32 = arith.constant 0 : i32
    %c0_i32_0 = arith.constant 0 : i32
    %c0_i32_1 = arith.constant 0 : i32
    return %c0_i32, %c0_i32_0 : i32, i32
  }
  func.func @transform_8(%arg0: i32) -> (i32, i32) {
    %c0_i32 = arith.constant 0 : i32
    %c0_i32_0 = arith.constant 0 : i32
    %c0_i32_1 = arith.constant 0 : i32
    return %c0_i32, %c0_i32_0 : i32, i32
  }
  func.func @transform_9(%arg0: i32) -> (i32, i32) {
    %c0_i32 = arith.constant 0 : i32
    %c0_i32_0 = arith.constant 0 : i32
    return %arg0, %c0_i32 : i32, i32
  }
}

</mosaic_0001>

<llo_original>
// kernel: critic_forward.1
$region0: #{critic_forward.1}
  #allocation0 [shape = 'u32[]', space=smem, size = 0x4, offset = 0x4, fixed_abs, tag = 'smem constant byte address 0x4 - core index']
  #allocation1 [shape = 'u32[144,128]{1,0:T(1,128)}', space=vmem, size = 0x12000, scoped, tag = 'internal scratch']
  #allocation2 [shape = 'f32[1,1]{1,0:T(1,128)S(1)}', space=vmem, size = 0x200, scoped, tag = 'scoped memory for critic_forward.1']
  %s0 = inlined_call_operand.vmem [shape: bf16[8,24], index: 0, kind: input, shape index: {}]
  %s1 = inlined_call_operand.vmem [shape: bf16[8,8], index: 1, kind: input, shape index: {}]
  %s2 = inlined_call_operand.vmem [shape: bf16[24,384], index: 2, kind: input, shape index: {}]
  %s3 = inlined_call_operand.vmem [shape: bf16[8,384], index: 3, kind: input, shape index: {}]
  %s4 = inlined_call_operand.vmem [shape: f32[1,384], index: 4, kind: input, shape index: {}]
  %s5 = inlined_call_operand.hbm [shape: bf16[384,256], index: 5, kind: input, shape index: {}]
  %s6 = inlined_call_operand.vmem [shape: f32[1,256], index: 6, kind: input, shape index: {}]
  %s7 = inlined_call_operand.vmem [shape: f32[1,256], index: 7, kind: input, shape index: {}]
  %s8 = inlined_call_operand.<no memory space> [shape: f32[1,1], index: 8, kind: input, shape index: {}]
  %s9 = inlined_call_operand.vmem [shape: f32[8,1], index: 9, kind: output, shape index: {}]
  %s10 = sld [smem:[#allocation0]]
  $region50: #{critic_forward.1} parent=0
    _
  %s12 = ssub.s32 1, %s10
  %s13 = scalar_select 0, %s12, %s10
  %v14 = vstv %s8
  %15 = vst [vmem:[#allocation2] sm:$0x1] %v14
  $region1: #{critic_forward.1} parent=0
    #allocation3 [shape = 'u8[196608]{0}', space=vmem, size = 0x30000, scoped, tag = 'input window, operand 5, single buffered']
    #allocation4 [shape = 's32[1]{0}', space=sflag, size = 0x4, scoped, tag = 'scoped memory for critic_forward.1']
    %16 = vsyncpa [#allocation4], 0
    // Predicated region
    $region2: #{critic_forward.1} parent=1 // pred_check
      _
    $region3: #{critic_forward.1} parent=1 // pred_check_branch
      %18 = sbr.rel (0) target = $region5
    $region4: #{critic_forward.1} parent=1 // pred_region
      _
    $region5: #{critic_forward.1} parent=1 // pred_fallthru
      _
    // Predicated region
    $region6: #{critic_forward.1} parent=1 // pred_check
      _
    $region7: #{critic_forward.1} parent=1 // pred_check_branch
      %20 = sbr.rel (0) target = $region9
    $region8: #{critic_forward.1} parent=1 // pred_region
      _
    $region9: #{critic_forward.1} parent=1 // pred_fallthru
      _
    // Predicated region
    $region10: #{critic_forward.1} parent=1 // pred_check
      _
    $region11: #{critic_forward.1} parent=1 // pred_check_branch
      %22 = sbr.rel (0) target = $region13
    $region12: #{critic_forward.1} parent=1 // pred_region
      _
    $region13: #{critic_forward.1} parent=1 // pred_fallthru
      _
    // Predicated region
    $region14: #{critic_forward.1} parent=1 // pred_check
      _
    $region15: #{critic_forward.1} parent=1 // pred_check_branch
      %24 = sbr.rel (0) target = $region17
    $region16: #{critic_forward.1} parent=1 // pred_region
      _
    $region17: #{critic_forward.1} parent=1 // pred_fallthru
      _
    // Predicated region
    $region18: #{critic_forward.1} parent=1 // pred_check
      _
    $region19: #{critic_forward.1} parent=1 // pred_check_branch
      %26 = sbr.rel (0) target = $region21
    $region20: #{critic_forward.1} parent=1 // pred_region
      _
    $region21: #{critic_forward.1} parent=1 // pred_fallthru
      _
    // Predicated region
    $region22: #{critic_forward.1} parent=1 // pred_check
      _
    $region23: #{critic_forward.1} parent=1 // pred_check_branch
      %28 = sbr.rel (0) target = $region25
    $region24: #{critic_forward.1} parent=1 // pred_region
      %s30 = ssub.s32 6144, 6144
      %31 = vsyncadd [#allocation4], %s30
      %s32 = sshll.u32 [#allocation3], 4
      %s33 = int_to_ptr.vmem [resolvable:$true] %s32
      %38 = dma.hbm_to_vmem [thread:$0]  %s5, 6144, %s33, [#allocation4], 128, 128, 8
    $region25: #{critic_forward.1} parent=1 // pred_fallthru
      _
    // Predicated region
    $region26: #{critic_forward.1} parent=1 // pred_check
      _
    $region27: #{critic_forward.1} parent=1 // pred_check_branch
      %40 = sbr.rel (0) target = $region29
    $region28: #{critic_forward.1} parent=1 // pred_region
      _
    $region29: #{critic_forward.1} parent=1 // pred_fallthru
      _
    // Predicated region
    $region30: #{critic_forward.1} parent=1 // pred_check
      _
    $region31: #{critic_forward.1} parent=1 // pred_check_branch
      %42 = sbr.rel (0) target = $region33
    $region32: #{critic_forward.1} parent=1 // pred_region
      _
    $region33: #{critic_forward.1} parent=1 // pred_fallthru
      _
    // Predicated region
    $region34: #{critic_forward.1} parent=1 // pred_check
      _
    $region35: #{critic_forward.1} parent=1 // pred_check_branch
      %44 = sbr.rel (0) target = $region37
    $region36: #{critic_forward.1} parent=1 // pred_region
      _
    $region37: #{critic_forward.1} parent=1 // pred_fallthru
      _
    // Predicated region
    $region38: #{critic_forward.1} parent=1 // pred_check
      _
    $region39: #{critic_forward.1} parent=1 // pred_check_branch
      %46 = sbr.rel (0) target = $region41
    $region40: #{critic_forward.1} parent=1 // pred_region
      %47 = dma.done [#allocation4], 6144
    $region41: #{critic_forward.1} parent=1 // pred_fallthru
      _
    %v49 = vld [vmem:[%s0] sm:$0xf]
    %v50 = vld [vmem:[%s2] sm:$0xff]
    %v51 = vld [vmem:[%s2 + $0x8] sm:$0xf]
    %v52 = vld [vmem:[%s2 + $0xc] sm:$0xff]
    %v53 = vld [vmem:[%s2 + $0x14] sm:$0xf]
    %v54 = vld [vmem:[%s2 + $0x18] sm:$0xff]
    %v55 = vld [vmem:[%s2 + $0x20] sm:$0xf]
    %v56 = vld [vmem:[%s1] sm:$0xf]
    %v57 = vld [vmem:[%s3] sm:$0xff]
    %v58 = vld [vmem:[%s3 + $0x8] sm:$0xf]
    %v61 = vunpack.c.l.b16 %v57
    %v62 = vunpack.c.h.b16 %v57
    %v63 = vunpack.c.l.b16 %v58
    %v64 = vpack.c.b16 %v61, %v61
    %v65 = vpack.c.b16 %v62, %v62
    %v66 = vpack.c.b16 %v63, %v63
    %vm67 = vcmask 64512
    %v69 = vsel %vm67, %v56, 0
    %vm71 = vcmask 1043456
    %v73 = vsel %vm71, %v64, 0
    %v76 = vsel %vm71, %v65, 0
    %v79 = vsel %vm71, %v66, 0
    %81 = vmatprep.subr.bf16.mxu0 0
    %82 = vmatpush1.bf16.msra.mxu0 0
    %83 = vmatprep.subr.bf16.mxu0 0
    %84 = vmatpush1.bf16.msra.mxu0 0
    %85 = vmatprep.subr.bf16.mxu0 0
    %86 = vmatpush1.bf16.msra.mxu0 0
    %87 = vmatprep.subr.bf16.mxu0 0
    %88 = vmatpush1.bf16.msra.mxu0 0
    %89 = vmatprep.subr.bf16.mxu0 0
    %90 = vmatpush1.bf16.msra.mxu0 0
    %91 = vmatprep.subr.bf16.mxu0 0
    %92 = vmatpush1.bf16.msra.mxu0 0
    %93 = vmatprep.subr.bf16.mxu0 0
    %94 = vmatpush1.bf16.msra.mxu0 0
    %95 = vmatprep.subr.bf16.mxu0 %v76
    %96 = vmatpush1.bf16.msra.mxu0 %v73
    %97 = vmatprep.subr.bf16.mxu0 0
    %98 = vmatpush2.bf16.msra.mxu0 0
    %99 = vmatprep.subr.bf16.mxu0 0
    %100 = vmatpush2.bf16.msra.mxu0 0
    %101 = vmatprep.subr.bf16.mxu0 0
    %102 = vmatpush2.bf16.msra.mxu0 0
    %103 = vmatprep.subr.bf16.mxu0 0
    %104 = vmatpush2.bf16.msra.mxu0 0
    %105 = vmatprep.subr.bf16.mxu0 0
    %106 = vmatpush2.bf16.msra.mxu0 0
    %107 = vmatprep.subr.bf16.mxu0 0
    %108 = vmatpush2.bf16.msra.mxu0 0
    %109 = vmatprep.subr.bf16.mxu0 0
    %110 = vmatpush2.bf16.msra.mxu0 0
    %111 = vmatprep.subr.bf16.mxu0 0
    %112 = vmatpush2.bf16.msra.mxu0 0
    %113 = vmatprep.mubr.bf16.mxu0 0
    %114 = vmatmul.mubr.bf16.gmra.mxu0 %v69
    %v115 = vpop.f32.mrf.mxu0
    %v116 = vadd.f32 0.0, %v115
    %v117 = vpop.f32.mrf.mxu0
    %v118 = vadd.f32 0.0, %v117
    %v119 = vpop.f32.mrf.mxu0
    %v120 = vpop.f32.mrf.mxu0
    %121 = vdwg.mxu0
    %122 = vmatprep.subr.bf16.mxu0 0
    %123 = vmatpush1.bf16.msra.mxu0 0
    %124 = vmatprep.subr.bf16.mxu0 0
    %125 = vmatpush1.bf16.msra.mxu0 0
    %126 = vmatprep.subr.bf16.mxu0 0
    %127 = vmatpush1.bf16.msra.mxu0 0
    %128 = vmatprep.subr.bf16.mxu0 0
    %129 = vmatpush1.bf16.msra.mxu0 0
    %130 = vmatprep.subr.bf16.mxu0 0
    %131 = vmatpush1.bf16.msra.mxu0 0
    %132 = vmatprep.subr.bf16.mxu0 0
    %133 = vmatpush1.bf16.msra.mxu0 0
    %134 = vmatprep.subr.bf16.mxu0 0
    %135 = vmatpush1.bf16.msra.mxu0 0
    %136 = vmatprep.subr.bf16.mxu0 0
    %137 = vmatpush1.bf16.msra.mxu0 %v79
    %138 = vmatprep.subr.bf16.mxu0 0
    %139 = vmatpush2.bf16.msra.mxu0 0
    %140 = vmatprep.subr.bf16.mxu0 0
    %141 = vmatpush2.bf16.msra.mxu0 0
    %142 = vmatprep.subr.bf16.mxu0 0
    %143 = vmatpush2.bf16.msra.mxu0 0
    %144 = vmatprep.subr.bf16.mxu0 0
    %145 = vmatpush2.bf16.msra.mxu0 0
    %146 = vmatprep.subr.bf16.mxu0 0
    %147 = vmatpush2.bf16.msra.mxu0 0
    %148 = vmatprep.subr.bf16.mxu0 0
    %149 = vmatpush2.bf16.msra.mxu0 0
    %150 = vmatprep.subr.bf16.mxu0 0
    %151 = vmatpush2.bf16.msra.mxu0 0
    %152 = vmatprep.subr.bf16.mxu0 0
    %153 = vmatpush2.bf16.msra.mxu0 0
    %154 = vmatprep.mubr.bf16.mxu0 0
    %155 = vmatmul.mubr.bf16.gmra.mxu0 %v69
    %v156 = vpop.f32.mrf.mxu0
    %v157 = vadd.f32 0.0, %v156
    %v158 = vpop.f32.mrf.mxu0
    %v159 = vpop.f32.mrf.mxu0
    %v160 = vpop.f32.mrf.mxu0
    %161 = vdwg.mxu0
    %v168 = vunpack.c.l.b16 %v50
    %v169 = vunpack.c.h.b16 %v50
    %v170 = vunpack.c.l.b16 %v51
    %v171 = vunpack.c.l.b16 %v52
    %v172 = vunpack.c.h.b16 %v52
    %v173 = vunpack.c.l.b16 %v53
    %v174 = vunpack.c.l.b16 %v54
    %v175 = vunpack.c.h.b16 %v54
    %v176 = vunpack.c.l.b16 %v55
    %v177 = vpack.c.b16 %v171, %v168
    %v178 = vpack.c.b16 %v172, %v169
    %v179 = vpack.c.b16 %v173, %v170
    %v180 = vpack.c.b16 %v174, %v174
    %v181 = vpack.c.b16 %v175, %v175
    %v182 = vpack.c.b16 %v176, %v176
    %vm186 = vcmask 195584
    %v188 = vsel %vm186, %v49, 0
    %v191 = vsel %vm71, %v180, 0
    %v194 = vsel %vm71, %v181, 0
    %v197 = vsel %vm71, %v182, 0
    %199 = vmatprep.subr.bf16.mxu0 0
    %200 = vmatpush1.bf16.msra.mxu0 0
    %201 = vmatprep.subr.bf16.mxu0 0
    %202 = vmatpush1.bf16.msra.mxu0 0
    %203 = vmatprep.subr.bf16.mxu0 0
    %204 = vmatpush1.bf16.msra.mxu0 0
    %205 = vmatprep.subr.bf16.mxu0 0
    %206 = vmatpush1.bf16.msra.mxu0 0
    %207 = vmatprep.subr.bf16.mxu0 0
    %208 = vmatpush1.bf16.msra.mxu0 0
    %209 = vmatprep.subr.bf16.mxu0 0
    %210 = vmatpush1.bf16.msra.mxu0 0
    %211 = vmatprep.subr.bf16.mxu0 %v194
    %212 = vmatpush1.bf16.msra.mxu0 %v191
    %213 = vmatprep.subr.bf16.mxu0 %v178
    %214 = vmatpush1.bf16.msra.mxu0 %v177
    %215 = vmatprep.subr.bf16.mxu0 0
    %216 = vmatpush2.bf16.msra.mxu0 0
    %217 = vmatprep.subr.bf16.mxu0 0
    %218 = vmatpush2.bf16.msra.mxu0 0
    %219 = vmatprep.subr.bf16.mxu0 0
    %220 = vmatpush2.bf16.msra.mxu0 0
    %221 = vmatprep.subr.bf16.mxu0 0
    %222 = vmatpush2.bf16.msra.mxu0 0
    %223 = vmatprep.subr.bf16.mxu0 0
    %224 = vmatpush2.bf16.msra.mxu0 0
    %225 = vmatprep.subr.bf16.mxu0 0
    %226 = vmatpush2.bf16.msra.mxu0 0
    %227 = vmatprep.subr.bf16.mxu0 0
    %228 = vmatpush2.bf16.msra.mxu0 0
    %229 = vmatprep.subr.bf16.mxu0 0
    %230 = vmatpush2.bf16.msra.mxu0 0
    %231 = vmatprep.mubr.bf16.mxu0 0
    %232 = vmatmul.mubr.bf16.gmra.mxu0 %v188
    %v233 = vpop.f32.mrf.mxu0
    %v234 = vadd.f32 %v116, %v233
    %v235 = vpop.f32.mrf.mxu0
    %v236 = vadd.f32 %v118, %v235
    %v237 = vpop.f32.mrf.mxu0
    %v238 = vpop.f32.mrf.mxu0
    %239 = vdwg.mxu0
    %240 = vmatprep.subr.bf16.mxu0 0
    %241 = vmatpush1.bf16.msra.mxu0 0
    %242 = vmatprep.subr.bf16.mxu0 0
    %243 = vmatpush1.bf16.msra.mxu0 0
    %244 = vmatprep.subr.bf16.mxu0 0
    %245 = vmatpush1.bf16.msra.mxu0 0
    %246 = vmatprep.subr.bf16.mxu0 0
    %247 = vmatpush1.bf16.msra.mxu0 0
    %248 = vmatprep.subr.bf16.mxu0 0
    %249 = vmatpush1.bf16.msra.mxu0 0
    %250 = vmatprep.subr.bf16.mxu0 0
    %251 = vmatpush1.bf16.msra.mxu0 0
    %252 = vmatprep.subr.bf16.mxu0 0
    %253 = vmatpush1.bf16.msra.mxu0 %v197
    %254 = vmatprep.subr.bf16.mxu0 0
    %255 = vmatpush1.bf16.msra.mxu0 %v179
    %256 = vmatprep.subr.bf16.mxu0 0
    %257 = vmatpush2.bf16.msra.mxu0 0
    %258 = vmatprep.subr.bf16.mxu0 0
    %259 = vmatpush2.bf16.msra.mxu0 0
    %260 = vmatprep.subr.bf16.mxu0 0
    %261 = vmatpush2.bf16.msra.mxu0 0
    %262 = vmatprep.subr.bf16.mxu0 0
    %263 = vmatpush2.bf16.msra.mxu0 0
    %264 = vmatprep.subr.bf16.mxu0 0
    %265 = vmatpush2.bf16.msra.mxu0 0
    %266 = vmatprep.subr.bf16.mxu0 0
    %267 = vmatpush2.bf16.msra.mxu0 0
    %268 = vmatprep.subr.bf16.mxu0 0
    %269 = vmatpush2.bf16.msra.mxu0 0
    %270 = vmatprep.subr.bf16.mxu0 0
    %271 = vmatpush2.bf16.msra.mxu0 0
    %272 = vmatprep.mubr.bf16.mxu0 0
    %273 = vmatmul.mubr.bf16.gmra.mxu0 %v188
    %v274 = vpop.f32.mrf.mxu0
    %v275 = vadd.f32 %v157, %v274
    %v276 = vpop.f32.mrf.mxu0
    %v277 = vpop.f32.mrf.mxu0
    %v278 = vpop.f32.mrf.mxu0
    %279 = vdwg.mxu0
    %v280 = vld [vmem:[%s4] sm:$0x7]
    %v282 = vlaneseq
    %v283 = vshrl.u32 %v282, 7
    %v284 = vsub.s32 0, %v283
    %v285 = vrot.slane %v280, %v284
    %v286 = vlaneseq
    %v287 = vshrl.u32 %v286, 7
    %v288 = vsub.s32 1, %v287
    %v289 = vrot.slane %v280, %v288
    %v290 = vlaneseq
    %v291 = vshrl.u32 %v290, 7
    %v292 = vsub.s32 2, %v291
    %v293 = vrot.slane %v280, %v292
    %v297 = vadd.f32 %v234, %v285
    %v298 = vadd.f32 %v236, %v289
    %v299 = vadd.f32 %v275, %v293
    %v300 = vmul.f32 %v297, 0.01
    %v301 = vmul.f32 %v298, 0.01
    %v302 = vmul.f32 %v299, 0.01
    %v303 = vmax.f32 %v297, %v300
    %v304 = vmax.f32 %v298, %v301
    %v305 = vmax.f32 %v299, %v302
    %v306 = vpack.c.bf16 %v303, %v303
    %v307 = vpack.c.bf16 %v304, %v304
    %v308 = vpack.c.bf16 %v305, %v305
    %v309 = vld [vmem:[#allocation3] sm:$0xff]
    %v310 = vld [vmem:[#allocation3 + $0x8] sm:$0xff]
    %v311 = vld [vmem:[#allocation3 + $0x10] sm:$0xff]
    %v312 = vld [vmem:[#allocation3 + $0x18] sm:$0xff]
    %v313 = vld [vmem:[#allocation3 + $0x20] sm:$0xff]
    %v314 = vld [vmem:[#allocation3 + $0x28] sm:$0xff]
    %v315 = vld [vmem:[#allocation3 + $0x30] sm:$0xff]
    %v316 = vld [vmem:[#allocation3 + $0x38] sm:$0xff]
    %v317 = vld [vmem:[#allocation3 + $0x40] sm:$0xff]
    %v318 = vld [vmem:[#allocation3 + $0x48] sm:$0xff]
    %v319 = vld [vmem:[#allocation3 + $0x50] sm:$0xff]
    %v320 = vld [vmem:[#allocation3 + $0x58] sm:$0xff]
    %v321 = vld [vmem:[#allocation3 + $0x60] sm:$0xff]
    %v322 = vld [vmem:[#allocation3 + $0x68] sm:$0xff]
    %v323 = vld [vmem:[#allocation3 + $0x70] sm:$0xff]
    %v324 = vld [vmem:[#allocation3 + $0x78] sm:$0xff]
    %v325 = vld [vmem:[#allocation3 + $0x80] sm:$0xff]
    %v326 = vld [vmem:[#allocation3 + $0x88] sm:$0xff]
    %v327 = vld [vmem:[#allocation3 + $0x90] sm:$0xff]
    %v328 = vld [vmem:[#allocation3 + $0x98] sm:$0xff]
    %v329 = vld [vmem:[#allocation3 + $0xa0] sm:$0xff]
    %v330 = vld [vmem:[#allocation3 + $0xa8] sm:$0xff]
    %v331 = vld [vmem:[#allocation3 + $0xb0] sm:$0xff]
    %v332 = vld [vmem:[#allocation3 + $0xb8] sm:$0xff]
    %v333 = vld [vmem:[#allocation3 + $0xc0] sm:$0xff]
    %v334 = vld [vmem:[#allocation3 + $0xc8] sm:$0xff]
    %v335 = vld [vmem:[#allocation3 + $0xd0] sm:$0xff]
    %v336 = vld [vmem:[#allocation3 + $0xd8] sm:$0xff]
    %v337 = vld [vmem:[#allocation3 + $0xe0] sm:$0xff]
    %v338 = vld [vmem:[#allocation3 + $0xe8] sm:$0xff]
    %v339 = vld [vmem:[#allocation3 + $0xf0] sm:$0xff]
    %v340 = vld [vmem:[#allocation3 + $0xf8] sm:$0xff]
    %v341 = vld [vmem:[#allocation3 + $0x100] sm:$0xff]
    %v342 = vld [vmem:[#allocation3 + $0x108] sm:$0xff]
    %v343 = vld [vmem:[#allocation3 + $0x110] sm:$0xff]
    %v344 = vld [vmem:[#allocation3 + $0x118] sm:$0xff]
    %v345 = vld [vmem:[#allocation3 + $0x120] sm:$0xff]
    %v346 = vld [vmem:[#allocation3 + $0x128] sm:$0xff]
    %v347 = vld [vmem:[#allocation3 + $0x130] sm:$0xff]
    %v348 = vld [vmem:[#allocation3 + $0x138] sm:$0xff]
    %v349 = vld [vmem:[#allocation3 + $0x140] sm:$0xff]
    %v350 = vld [vmem:[#allocation3 + $0x148] sm:$0xff]
    %v351 = vld [vmem:[#allocation3 + $0x150] sm:$0xff]
    %v352 = vld [vmem:[#allocation3 + $0x158] sm:$0xff]
    %v353 = vld [vmem:[#allocation3 + $0x160] sm:$0xff]
    %v354 = vld [vmem:[#allocation3 + $0x168] sm:$0xff]
    %v355 = vld [vmem:[#allocation3 + $0x170] sm:$0xff]
    %v356 = vld [vmem:[#allocation3 + $0x178] sm:$0xff]
    %v357 = vld [vmem:[%s6] sm:$0x3]
    %v359 = vlaneseq
    %v360 = vshrl.u32 %v359, 7
    %v361 = vsub.s32 0, %v360
    %v362 = vrot.slane %v357, %v361
    %v363 = vlaneseq
    %v364 = vshrl.u32 %v363, 7
    %v365 = vsub.s32 1, %v364
    %v366 = vrot.slane %v357, %v365
    %v417 = vunpack.c.l.b16 %v309
    %v418 = vunpack.c.h.b16 %v309
    %v419 = vunpack.c.l.b16 %v310
    %v420 = vunpack.c.h.b16 %v310
    %v421 = vunpack.c.l.b16 %v311
    %v422 = vunpack.c.h.b16 %v311
    %v423 = vunpack.c.l.b16 %v312
    %v424 = vunpack.c.h.b16 %v312
    %v425 = vunpack.c.l.b16 %v313
    %v426 = vunpack.c.h.b16 %v313
    %v427 = vunpack.c.l.b16 %v314
    %v428 = vunpack.c.h.b16 %v314
    %v429 = vunpack.c.l.b16 %v315
    %v430 = vunpack.c.h.b16 %v315
    %v431 = vunpack.c.l.b16 %v316
    %v432 = vunpack.c.h.b16 %v316
    %v433 = vunpack.c.l.b16 %v317
    %v434 = vunpack.c.h.b16 %v317
    %v435 = vunpack.c.l.b16 %v318
    %v436 = vunpack.c.h.b16 %v318
    %v437 = vunpack.c.l.b16 %v319
    %v438 = vunpack.c.h.b16 %v319
    %v439 = vunpack.c.l.b16 %v320
    %v440 = vunpack.c.h.b16 %v320
    %v441 = vunpack.c.l.b16 %v321
    %v442 = vunpack.c.h.b16 %v321
    %v443 = vunpack.c.l.b16 %v322
    %v444 = vunpack.c.h.b16 %v322
    %v445 = vunpack.c.l.b16 %v323
    %v446 = vunpack.c.h.b16 %v323
    %v447 = vunpack.c.l.b16 %v324
    %v448 = vunpack.c.h.b16 %v324
    %v449 = vunpack.c.l.b16 %v325
    %v450 = vunpack.c.h.b16 %v325
    %v451 = vunpack.c.l.b16 %v326
    %v452 = vunpack.c.h.b16 %v326
    %v453 = vunpack.c.l.b16 %v327
    %v454 = vunpack.c.h.b16 %v327
    %v455 = vunpack.c.l.b16 %v328
    %v456 = vunpack.c.h.b16 %v328
    %v457 = vunpack.c.l.b16 %v329
    %v458 = vunpack.c.h.b16 %v329
    %v459 = vunpack.c.l.b16 %v330
    %v460 = vunpack.c.h.b16 %v330
    %v461 = vunpack.c.l.b16 %v331
    %v462 = vunpack.c.h.b16 %v331
    %v463 = vunpack.c.l.b16 %v332
    %v464 = vunpack.c.h.b16 %v332
    %v465 = vunpack.c.l.b16 %v333
    %v466 = vunpack.c.h.b16 %v333
    %v467 = vunpack.c.l.b16 %v334
    %v468 = vunpack.c.h.b16 %v334
    %v469 = vunpack.c.l.b16 %v335
    %v470 = vunpack.c.h.b16 %v335
    %v471 = vunpack.c.l.b16 %v336
    %v472 = vunpack.c.h.b16 %v336
    %v473 = vunpack.c.l.b16 %v337
    %v474 = vunpack.c.h.b16 %v337
    %v475 = vunpack.c.l.b16 %v338
    %v476 = vunpack.c.h.b16 %v338
    %v477 = vunpack.c.l.b16 %v339
    %v478 = vunpack.c.h.b16 %v339
    %v479 = vunpack.c.l.b16 %v340
    %v480 = vunpack.c.h.b16 %v340
    %v481 = vunpack.c.l.b16 %v341
    %v482 = vunpack.c.h.b16 %v341
    %v483 = vunpack.c.l.b16 %v342
    %v484 = vunpack.c.h.b16 %v342
    %v485 = vunpack.c.l.b16 %v343
    %v486 = vunpack.c.h.b16 %v343
    %v487 = vunpack.c.l.b16 %v344
    %v488 = vunpack.c.h.b16 %v344
    %v489 = vunpack.c.l.b16 %v345
    %v490 = vunpack.c.h.b16 %v345
    %v491 = vunpack.c.l.b16 %v346
    %v492 = vunpack.c.h.b16 %v346
    %v493 = vunpack.c.l.b16 %v347
    %v494 = vunpack.c.h.b16 %v347
    %v495 = vunpack.c.l.b16 %v348
    %v496 = vunpack.c.h.b16 %v348
    %v497 = vunpack.c.l.b16 %v349
    %v498 = vunpack.c.h.b16 %v349
    %v499 = vunpack.c.l.b16 %v350
    %v500 = vunpack.c.h.b16 %v350
    %v501 = vunpack.c.l.b16 %v351
    %v502 = vunpack.c.h.b16 %v351
    %v503 = vunpack.c.l.b16 %v352
    %v504 = vunpack.c.h.b16 %v352
    %v505 = vunpack.c.l.b16 %v353
    %v506 = vunpack.c.h.b16 %v353
    %v507 = vunpack.c.l.b16 %v354
    %v508 = vunpack.c.h.b16 %v354
    %v509 = vunpack.c.l.b16 %v355
    %v510 = vunpack.c.h.b16 %v355
    %v511 = vunpack.c.l.b16 %v356
    %v512 = vunpack.c.h.b16 %v356
    %v513 = vpack.c.b16 %v419, %v417
    %v514 = vpack.c.b16 %v420, %v418
    %v515 = vpack.c.b16 %v423, %v421
    %v516 = vpack.c.b16 %v424, %v422
    %v517 = vpack.c.b16 %v427, %v425
    %v518 = vpack.c.b16 %v428, %v426
    %v519 = vpack.c.b16 %v431, %v429
    %v520 = vpack.c.b16 %v432, %v430
    %v521 = vpack.c.b16 %v435, %v433
    %v522 = vpack.c.b16 %v436, %v434
    %v523 = vpack.c.b16 %v439, %v437
    %v524 = vpack.c.b16 %v440, %v438
    %v525 = vpack.c.b16 %v443, %v441
    %v526 = vpack.c.b16 %v444, %v442
    %v527 = vpack.c.b16 %v447, %v445
    %v528 = vpack.c.b16 %v448, %v446
    %v529 = vpack.c.b16 %v451, %v449
    %v530 = vpack.c.b16 %v452, %v450
    %v531 = vpack.c.b16 %v455, %v453
    %v532 = vpack.c.b16 %v456, %v454
    %v533 = vpack.c.b16 %v459, %v457
    %v534 = vpack.c.b16 %v460, %v458
    %v535 = vpack.c.b16 %v463, %v461
    %v536 = vpack.c.b16 %v464, %v462
    %v537 = vpack.c.b16 %v467, %v465
    %v538 = vpack.c.b16 %v468, %v466
    %v539 = vpack.c.b16 %v471, %v469
    %v540 = vpack.c.b16 %v472, %v470
    %v541 = vpack.c.b16 %v475, %v473
    %v542 = vpack.c.b16 %v476, %v474
    %v543 = vpack.c.b16 %v479, %v477
    %v544 = vpack.c.b16 %v480, %v478
    %v545 = vpack.c.b16 %v483, %v481
    %v546 = vpack.c.b16 %v484, %v482
    %v547 = vpack.c.b16 %v487, %v485
    %v548 = vpack.c.b16 %v488, %v486
    %v549 = vpack.c.b16 %v491, %v489
    %v550 = vpack.c.b16 %v492, %v490
    %v551 = vpack.c.b16 %v495, %v493
    %v552 = vpack.c.b16 %v496, %v494
    %v553 = vpack.c.b16 %v499, %v497
    %v554 = vpack.c.b16 %v500, %v498
    %v555 = vpack.c.b16 %v503, %v501
    %v556 = vpack.c.b16 %v504, %v502
    %v557 = vpack.c.b16 %v507, %v505
    %v558 = vpack.c.b16 %v508, %v506
    %v559 = vpack.c.b16 %v511, %v509
    %v560 = vpack.c.b16 %v512, %v510
    %609 = vmatprep.subr.bf16.mxu0 %v528
    %610 = vmatpush1.bf16.msra.mxu0 %v527
    %611 = vmatprep.subr.bf16.mxu0 %v526
    %612 = vmatpush1.bf16.msra.mxu0 %v525
    %613 = vmatprep.subr.bf16.mxu0 %v524
    %614 = vmatpush1.bf16.msra.mxu0 %v523
    %615 = vmatprep.subr.bf16.mxu0 %v522
    %616 = vmatpush1.bf16.msra.mxu0 %v521
    %617 = vmatprep.subr.bf16.mxu0 %v520
    %618 = vmatpush1.bf16.msra.mxu0 %v519
    %619 = vmatprep.subr.bf16.mxu0 %v518
    %620 = vmatpush1.bf16.msra.mxu0 %v517
    %621 = vmatprep.subr.bf16.mxu0 %v516
    %622 = vmatpush1.bf16.msra.mxu0 %v515
    %623 = vmatprep.subr.bf16.mxu0 %v514
    %624 = vmatpush1.bf16.msra.mxu0 %v513
    %625 = vmatprep.subr.bf16.mxu0 %v544
    %626 = vmatpush2.bf16.msra.mxu0 %v543
    %627 = vmatprep.subr.bf16.mxu0 %v542
    %628 = vmatpush2.bf16.msra.mxu0 %v541
    %629 = vmatprep.subr.bf16.mxu0 %v540
    %630 = vmatpush2.bf16.msra.mxu0 %v539
    %631 = vmatprep.subr.bf16.mxu0 %v538
    %632 = vmatpush2.bf16.msra.mxu0 %v537
    %633 = vmatprep.subr.bf16.mxu0 %v536
    %634 = vmatpush2.bf16.msra.mxu0 %v535
    %635 = vmatprep.subr.bf16.mxu0 %v534
    %636 = vmatpush2.bf16.msra.mxu0 %v533
    %637 = vmatprep.subr.bf16.mxu0 %v532
    %638 = vmatpush2.bf16.msra.mxu0 %v531
    %639 = vmatprep.subr.bf16.mxu0 %v530
    %640 = vmatpush2.bf16.msra.mxu0 %v529
    %641 = vmatprep.mubr.bf16.mxu0 %v307
    %642 = vmatmul.mubr.bf16.gmra.mxu0 %v306
    %v643 = vpop.f32.mrf.mxu0
    %v644 = vadd.f32 %v362, %v643
    %v645 = vpop.f32.mrf.mxu0
    %v646 = vadd.f32 %v366, %v645
    %v647 = vpop.f32.mrf.mxu0
    %v648 = vpop.f32.mrf.mxu0
    %649 = vdwg.mxu0
    %650 = vmatprep.subr.bf16.mxu0 %v560
    %651 = vmatpush1.bf16.msra.mxu0 %v559
    %652 = vmatprep.subr.bf16.mxu0 %v558
    %653 = vmatpush1.bf16.msra.mxu0 %v557
    %654 = vmatprep.subr.bf16.mxu0 %v556
    %655 = vmatpush1.bf16.msra.mxu0 %v555
    %656 = vmatprep.subr.bf16.mxu0 %v554
    %657 = vmatpush1.bf16.msra.mxu0 %v553
    %658 = vmatprep.subr.bf16.mxu0 %v552
    %659 = vmatpush1.bf16.msra.mxu0 %v551
    %660 = vmatprep.subr.bf16.mxu0 %v550
    %661 = vmatpush1.bf16.msra.mxu0 %v549
    %662 = vmatprep.subr.bf16.mxu0 %v548
    %663 = vmatpush1.bf16.msra.mxu0 %v547
    %664 = vmatprep.subr.bf16.mxu0 %v546
    %665 = vmatpush1.bf16.msra.mxu0 %v545
    %666 = vmatprep.subr.bf16.mxu0 0
    %667 = vmatpush2.bf16.msra.mxu0 0
    %668 = vmatprep.subr.bf16.mxu0 0
    %669 = vmatpush2.bf16.msra.mxu0 0
    %670 = vmatprep.subr.bf16.mxu0 0
    %671 = vmatpush2.bf16.msra.mxu0 0
    %672 = vmatprep.subr.bf16.mxu0 0
    %673 = vmatpush2.bf16.msra.mxu0 0
    %674 = vmatprep.subr.bf16.mxu0 0
    %675 = vmatpush2.bf16.msra.mxu0 0
    %676 = vmatprep.subr.bf16.mxu0 0
    %677 = vmatpush2.bf16.msra.mxu0 0
    %678 = vmatprep.subr.bf16.mxu0 0
    %679 = vmatpush2.bf16.msra.mxu0 0
    %680 = vmatprep.subr.bf16.mxu0 0
    %681 = vmatpush2.bf16.msra.mxu0 0
    %682 = vmatprep.mubr.bf16.mxu0 0
    %683 = vmatmul.mubr.bf16.gmra.mxu0 %v308
    %v684 = vpop.f32.mrf.mxu0
    %v685 = vadd.f32 %v644, %v684
    %v686 = vpop.f32.mrf.mxu0
    %v687 = vadd.f32 %v646, %v686
    %v688 = vpop.f32.mrf.mxu0
    %v689 = vpop.f32.mrf.mxu0
    %690 = vdwg.mxu0
    %v691 = vmul.f32 %v685, 0.01
    %v692 = vmul.f32 %v687, 0.01
    %v693 = vmax.f32 %v685, %v691
    %v694 = vmax.f32 %v687, %v692
    %v695 = vld [vmem:[%s7] sm:$0x3]
    %v697 = vlaneseq
    %v698 = vshrl.u32 %v697, 7
    %v699 = vsub.s32 0, %v698
    %v700 = vrot.slane %v695, %v699
    %v701 = vlaneseq
    %v702 = vshrl.u32 %v701, 7
    %v703 = vsub.s32 1, %v702
    %v704 = vrot.slane %v695, %v703
    %v707 = vmul.f32 %v693, %v700
    %v708 = vmul.f32 %v694, %v704
    %v709 = vadd.f32 %v707, %v708
    %710 = vadd.xlane.f32.xlu0 %v709
    %v711 = vpop.xlane.xlu0 %710
    %v712 = vld [vmem:[#allocation2] sm:$0x1]
    %v714 = vlaneseq
    %v715 = vshrl.u32 %v714, 7
    %v716 = vsub.s32 0, %v715
    %v717 = vrot.slane %v712, %v716
    %v719 = vadd.f32 %v711, %v717
    %vm720 = vcmask 7168
    %721 = vst.msk [vmem:[%s9] sm:$0xff] %vm720, %v719
    // Predicated region
    $region42: #{critic_forward.1} parent=1 // pred_check
      _
    $region43: #{critic_forward.1} parent=1 // pred_check_branch
      %723 = sbr.rel (0) target = $region45
    $region44: #{critic_forward.1} parent=1 // pred_region
      _
    $region45: #{critic_forward.1} parent=1 // pred_fallthru
      _
    // Predicated region
    $region46: #{critic_forward.1} parent=1 // pred_check
      _
    $region47: #{critic_forward.1} parent=1 // pred_check_branch
      %725 = sbr.rel (0) target = $region49
    $region48: #{critic_forward.1} parent=1 // pred_region
      _
    $region49: #{critic_forward.1} parent=1 // pred_fallthru
      _
    %726 = vsyncpa [#allocation4], 1

</llo_original>
